<compile_context>
chip_gen: v6e
topology: v6e:2x2x1
jax: 0.10.0
libtpu: 0.0.40
codegen_flags: <defaults>
</compile_context>

<pallas_src>
import functools

import jax
import jax.numpy as jnp
from jax.experimental import pallas as pl
from jax.experimental.pallas import tpu as pltpu


# Conservative working-set budget: leaves headroom under v7x's 64 MiB physical
# VMEM (v5e/v6e have 128 MiB, so they are never the binding constraint).
_VMEM_BUDGET = 48 << 20


def _round_up(x, m):
    return (x + m - 1) // m * m


def _vmem_bytes(tm, d, k, wc, x_itemsize):
    """Estimate of the double-buffered VMEM working set for one grid step."""
    return (2 * tm * d * x_itemsize      # x tile, double-buffered
            + 2 * tm * k * 4             # output tile, double-buffered
            + 2 * d * wc * x_itemsize    # fused W (resident; counted 2x)
            + 2 * 128 * wc * 4           # fused bias tile (sublane-padded)
            + 6 * tm * wc * 4)           # in-kernel f32 temporaries headroom


def _pick_tm(batch, tm, d, wc, k, x_itemsize):
    if tm is None:
        if batch <= 8:
            tm = batch                    # block == full dim is always legal
        else:
            tm = min(512, 8 * (batch // 8))   # big tile, multiple of 8, <= B
    # Shrink until the double-buffered working set fits the VMEM budget (v7x).
    while tm > 8 and _vmem_bytes(tm, d, k, wc, x_itemsize) > _VMEM_BUDGET:
        tm = max(8, ((tm // 2) // 8) * 8)
    return tm


def fuse_comb_params(w1, b1, w2, b2, *, align_heads=True,
                     param_dtype=jnp.float32):
    """Fuse the two classifier heads into one (D, Wc) weight / (1, Wc) bias.

    With align_heads=True each head is padded to a 128-lane boundary so the
    in-kernel logit slices are vreg-aligned (free on v6e/v7x's 256-wide MXU;
    costs at most one extra 128-col pass on v5e).  Call once and reuse across
    forward calls to keep the concat out of the per-call path.
    """
    k = w1.shape[1]
    if align_heads and k % 128 != 0:
        kp = _round_up(k, 128)
        pad = kp - k
        w1 = jnp.pad(w1, ((0, 0), (0, pad)))
        w2 = jnp.pad(w2, ((0, 0), (0, pad)))
        b1 = jnp.pad(b1, ((0, 0), (0, pad)))
        b2 = jnp.pad(b2, ((0, 0), (0, pad)))
    else:
        kp = k
    w = jnp.concatenate([w1, w2], axis=1).astype(param_dtype)
    b = jnp.concatenate([b1, b2], axis=1).astype(jnp.float32)  # bias stays f32
    return w, b, kp


def _comb_kernel(x_ref, w_ref, b_ref, out_ref, *, num_classes, head_off, tau):
    # x_ref: (TM, D), w_ref: (D, Wc), b_ref: (1, Wc), out_ref: (TM, K)
    k = num_classes

    # One fused matmul for both heads; accumulate in f32 on the MXU.
    logits = (
        jnp.dot(x_ref[...], w_ref[...], preferred_element_type=jnp.float32)
        + b_ref[...]
    )
    l1 = logits[:, :k]                          # net_orig logits (lane 0)
    l2 = logits[:, head_off:head_off + k]       # net_fake logits (lane-aligned)

    # Softmax for head 1.  Keep the denominator reciprocal: the max logit's
    # exp is exactly 1, so max(p1) == r1 and the gating compare below needs
    # no extra cross-lane max over p1.
    m1 = jnp.max(l1, axis=-1, keepdims=True)
    e1 = jnp.exp(l1 - m1)
    r1 = pl.reciprocal(jnp.sum(e1, axis=-1, keepdims=True), approx=False)
    p1 = e1 * r1

    # Softmax for head 2.
    m2 = jnp.max(l2, axis=-1, keepdims=True)
    e2 = jnp.exp(l2 - m2)
    r2 = pl.reciprocal(jnp.sum(e2, axis=-1, keepdims=True), approx=False)
    p2 = e2 * r2

    # cond_in = max(x1, dim=1) > tau  (per row); out = x1*cond + x2*~cond
    cond = r1 > tau
    out_ref[...] = jnp.where(cond, p1, p2)


def comb_net_logit(x_nchw, w1, b1, w2, b2, tau=0.5, *, tm=None,
                   use_bf16_matmul=False, align_heads=True):
    """Fused CombNet_logit forward (two linear heads + softmax + gating)."""
    B, C, H, W = x_nchw.shape
    D = C * H * W
    K = w1.shape[1]

    # NCHW -> (B, D) is layout-preserving for a contiguous row-major array,
    # so XLA treats it as free metadata (no HBM copy).
    x_flat = x_nchw.reshape(B, D)
    xin_dtype = jnp.bfloat16 if use_bf16_matmul else jnp.float32
    if x_flat.dtype != xin_dtype:
        # NOTE: for the bf16 path to be a real ~2x bandwidth win, x should
        # already live in bf16 (stage it upstream); this cast is a full HBM
        # read+write of x.
        x_flat = x_flat.astype(xin_dtype)

    # Fuse the two heads once (hoist this call out of hot loops if the
    # parameters are reused across forward calls).
    w, b, head_off = fuse_comb_params(
        w1, b1, w2, b2, align_heads=align_heads, param_dtype=xin_dtype)
    wc = w.shape[1]

    x_itemsize = jnp.dtype(xin_dtype).itemsize
    tm = _pick_tm(B, tm, D, wc, K, x_itemsize)
    grid = pl.cdiv(B, tm)          # no padding of x: ragged tail block is
                                   # edge-masked by Pallas, stores beyond B
                                   # are dropped automatically.

    est = _vmem_bytes(tm, D, K, wc, x_itemsize)
    vmem_limit = int(min(max(est + (8 << 20), 32 << 20), 64 << 20))

    out = pl.pallas_call(
        functools.partial(_comb_kernel, num_classes=K, head_off=head_off,
                          tau=float(tau)),
        out_shape=jax.ShapeDtypeStruct((B, K), jnp.float32),
        grid=(grid,),
        in_specs=[
            pl.BlockSpec((tm, D), lambda i: (i, 0)),   # x: one batch tile/step
            pl.BlockSpec((D, wc), lambda i: (0, 0)),   # fused W: VMEM-resident
            pl.BlockSpec((1, wc), lambda i: (0, 0)),   # fused b: VMEM-resident
        ],
        out_specs=pl.BlockSpec((tm, K), lambda i: (i, 0)),
        compiler_params=pltpu.CompilerParams(
            dimension_semantics=("parallel",),
            vmem_limit_bytes=vmem_limit),
    )(x_flat, w, b)

    return out


def _reference(x_nchw, w1, b1, w2, b2, tau=0.5):
    B, C, H, W = x_nchw.shape
    xf = x_nchw.reshape(B, C * H * W).astype(jnp.float32)
    x1 = jax.nn.softmax(xf @ w1 + b1, axis=1)
    x2 = jax.nn.softmax(xf @ w2 + b2, axis=1)
    cond = (jnp.max(x1, axis=1) > tau)[:, None]
    return x1 * cond + x2 * (~cond)


if __name__ == "__main__":
    key = jax.random.PRNGKey(0)
    kx, kw1, kb1, kw2, kb2 = jax.random.split(key, 5)

    B, C, H, W = 16, 4, 16, 16        # small NCHW input
    K = 10                            # number of classes
    D = C * H * W

    x = jax.random.normal(kx, (B, C, H, W), dtype=jnp.float32)
    # Deterministic synthetic parameters for the two base nets (linear heads).
    w1 = 0.05 * jax.random.normal(kw1, (D, K), dtype=jnp.float32)
    b1 = 0.1 * jax.random.normal(kb1, (1, K), dtype=jnp.float32)
    w2 = 0.05 * jax.random.normal(kw2, (D, K), dtype=jnp.float32)
    b2 = 0.1 * jax.random.normal(kb2, (1, K), dtype=jnp.float32)

    out = comb_net_logit(x, w1, b1, w2, b2, tau=0.5)
    out = jax.block_until_ready(out)

    ref = _reference(x, w1, b1, w2, b2, tau=0.5)
    assert out.shape == (B, K)
    assert jnp.allclose(out, ref, atol=1e-5, rtol=1e-5), "mismatch vs reference"

    print("KERNEL_OK")
</pallas_src>

<mosaic_0001>
module attributes {stable_mosaic.version = 11 : i64} {
  func.func @_comb_kernel(%arg0: i32, %arg1: memref<16x1024xf32, #tpu.memory_space<vmem>>, %arg2: memref<1024x256xf32, #tpu.memory_space<vmem>>, %arg3: memref<1x256xf32, #tpu.memory_space<vmem>>, %arg4: memref<16x10xf32, #tpu.memory_space<vmem>>) attributes {dimension_semantics = [#tpu.dimension_semantics<parallel>], iteration_bounds = array<i64: 1>, scalar_prefetch = 0 : i64, scratch_operands = 0 : i64, tpu.core_type = #tpu.core_type<tc>, window_params = [{transform_indices = @transform_0, window_bounds = array<i64: 16, 1024>}, {pipeline_mode = #tpu.pipeline_mode<synchronous>, transform_indices = @transform_1, window_bounds = array<i64: 1024, 256>}, {pipeline_mode = #tpu.pipeline_mode<synchronous>, transform_indices = @transform_2, window_bounds = array<i64: 1, 256>}, {transform_indices = @transform_3, window_bounds = array<i64: 16, 10>}]} {
    %c0 = arith.constant 0 : index
    %c0_0 = arith.constant 0 : index
    %0 = vector.load %arg1[%c0, %c0_0] : memref<16x1024xf32, #tpu.memory_space<vmem>>, vector<16x1024xf32>
    %c0_1 = arith.constant 0 : index
    %c0_2 = arith.constant 0 : index
    %1 = vector.load %arg2[%c0_1, %c0_2] : memref<1024x256xf32, #tpu.memory_space<vmem>>, vector<1024x256xf32>
    %cst = arith.constant dense<0.000000e+00> : vector<16x256xf32>
    %2 = tpu.matmul %0, %1, %cst {dimension_numbers = #tpu.dot_dimension_numbers<[1], [0], [0], [1], [0, 0, 1, 1], [], []>} : vector<16x1024xf32>, vector<1024x256xf32>, vector<16x256xf32> -> vector<16x256xf32>
    %c0_3 = arith.constant 0 : index
    %c0_4 = arith.constant 0 : index
    %3 = vector.load %arg3[%c0_3, %c0_4] : memref<1x256xf32, #tpu.memory_space<vmem>>, vector<1x256xf32>
    %4 = vector.broadcast %3 : vector<1x256xf32> to vector<16x256xf32>
    %5 = arith.addf %2, %4 : vector<16x256xf32>
    %6 = vector.extract_strided_slice %5 {offsets = [0, 0], sizes = [16, 10], strides = [1, 1]} : vector<16x256xf32> to vector<16x10xf32>
    %7 = vector.extract_strided_slice %5 {offsets = [0, 128], sizes = [16, 10], strides = [1, 1]} : vector<16x256xf32> to vector<16x10xf32>
    %cst_5 = arith.constant dense<0xFF800000> : vector<16xf32>
    %8 = vector.multi_reduction <maximumf>, %6, %cst_5 [1] : vector<16x10xf32> to vector<16xf32>
    %9 = vector.shape_cast %8 : vector<16xf32> to vector<16x1xf32>
    %10 = vector.broadcast %9 : vector<16x1xf32> to vector<16x10xf32>
    %11 = arith.subf %6, %10 : vector<16x10xf32>
    %12 = math.exp %11 : vector<16x10xf32>
    %cst_6 = arith.constant dense<0.000000e+00> : vector<16xf32>
    %13 = vector.multi_reduction <add>, %12, %cst_6 [1] : vector<16x10xf32> to vector<16xf32>
    %14 = vector.shape_cast %13 : vector<16xf32> to vector<16x1xf32>
    %15 = tpu.reciprocal %14 : vector<16x1xf32> -> vector<16x1xf32>
    %16 = vector.broadcast %15 : vector<16x1xf32> to vector<16x10xf32>
    %17 = arith.mulf %12, %16 : vector<16x10xf32>
    %cst_7 = arith.constant dense<0xFF800000> : vector<16xf32>
    %18 = vector.multi_reduction <maximumf>, %7, %cst_7 [1] : vector<16x10xf32> to vector<16xf32>
    %19 = vector.shape_cast %18 : vector<16xf32> to vector<16x1xf32>
    %20 = vector.broadcast %19 : vector<16x1xf32> to vector<16x10xf32>
    %21 = arith.subf %7, %20 : vector<16x10xf32>
    %22 = math.exp %21 : vector<16x10xf32>
    %cst_8 = arith.constant dense<0.000000e+00> : vector<16xf32>
    %23 = vector.multi_reduction <add>, %22, %cst_8 [1] : vector<16x10xf32> to vector<16xf32>
    %24 = vector.shape_cast %23 : vector<16xf32> to vector<16x1xf32>
    %25 = tpu.reciprocal %24 : vector<16x1xf32> -> vector<16x1xf32>
    %26 = vector.broadcast %25 : vector<16x1xf32> to vector<16x10xf32>
    %27 = arith.mulf %22, %26 : vector<16x10xf32>
    %cst_9 = arith.constant 5.000000e-01 : f32
    %28 = vector.broadcast %cst_9 : f32 to vector<16x1xf32>
    %29 = arith.cmpf ogt, %15, %28 : vector<16x1xf32>
    %30 = vector.shape_cast %29 : vector<16x1xi1> to vector<16x1xi1>
    %31 = vector.broadcast %30 : vector<16x1xi1> to vector<16x10xi1>
    %32 = arith.select %31, %17, %27 : vector<16x10xi1>, vector<16x10xf32>
    %c0_10 = arith.constant 0 : index
    %c0_11 = arith.constant 0 : index
    %33 = vector.load %arg4[%c0_10, %c0_11] : memref<16x10xf32, #tpu.memory_space<vmem>>, vector<16x10xf32>
    tpu.vector_store %arg4[%c0_10, %c0_11], %32 {strides = array<i32>} : memref<16x10xf32, #tpu.memory_space<vmem>>, vector<16x10xf32>,
    return
  }
  func.func @transform_0(%arg0: i32) -> (i32, i32) {
    %c0_i32 = arith.constant 0 : i32
    %c0_i32_0 = arith.constant 0 : i32
    return %arg0, %c0_i32 : i32, i32
  }
  func.func @transform_1(%arg0: i32) -> (i32, i32) {
    %c0_i32 = arith.constant 0 : i32
    %c0_i32_0 = arith.constant 0 : i32
    %c0_i32_1 = arith.constant 0 : i32
    return %c0_i32, %c0_i32_0 : i32, i32
  }
  func.func @transform_2(%arg0: i32) -> (i32, i32) {
    %c0_i32 = arith.constant 0 : i32
    %c0_i32_0 = arith.constant 0 : i32
    %c0_i32_1 = arith.constant 0 : i32
    return %c0_i32, %c0_i32_0 : i32, i32
  }
  func.func @transform_3(%arg0: i32) -> (i32, i32) {
    %c0_i32 = arith.constant 0 : i32
    %c0_i32_0 = arith.constant 0 : i32
    return %arg0, %c0_i32 : i32, i32
  }
}

</mosaic_0001>

<llo_original>
// kernel: tpu_custom_call.1
$region0: #{tpu_custom_call.1}
  #allocation0 [shape = 'u32[]', space=smem, size = 0x4, offset = 0x4, fixed_abs, tag = 'smem constant byte address 0x4 - core index']
  #allocation1 [shape = 'u32[144,128]{1,0:T(1,128)}', space=vmem, size = 0x12000, scoped, tag = 'internal scratch']
  %s0 = inlined_call_operand.hbm [shape: f32[16,1024], index: 0, kind: input, shape index: {}]
  %s1 = inlined_call_operand.hbm [shape: f32[1024,256], index: 1, kind: input, shape index: {}]
  %s2 = inlined_call_operand.vmem [shape: f32[1,256], index: 2, kind: input, shape index: {}]
  %s3 = inlined_call_operand.hbm [shape: f32[16,10], index: 3, kind: output, shape index: {}]
  %s4 = sld [smem:[#allocation0]]
  $region30: #{tpu_custom_call.1} parent=0
    _
  %s6 = ssub.s32 1, %s4
  %s7 = scalar_select 0, %s6, %s4
  $region1: #{tpu_custom_call.1} parent=0
    #allocation2 [shape = 'u8[65536]{0}', space=vmem, size = 0x10000, scoped, tag = 'input window, operand 0, single buffered']
    #allocation3 [shape = 's32[1]{0}', space=sflag, size = 0x4, scoped, tag = 'scoped memory for tpu_custom_call.1']
    #allocation4 [shape = 's32[1]{0}', space=sflag, size = 0x4, scoped, tag = 'scoped memory for tpu_custom_call.1']
    #allocation5 [shape = 'u8[1048576]{0}', space=vmem, size = 0x100000, scoped, tag = 'input window, operand 1, single buffered']
    #allocation6 [shape = 's32[1]{0}', space=sflag, size = 0x4, scoped, tag = 'scoped memory for tpu_custom_call.1']
    #allocation7 [shape = 'u8[8192]{0}', space=vmem, size = 0x2000, scoped, tag = 'output window, operand 0, single buffered']
    %8 = vsyncpa [#allocation3], 0
    %9 = vsyncpa [#allocation6], 0
    %10 = vsyncpa [#allocation4], 0
    // Predicated region
    $region2: #{tpu_custom_call.1} parent=1 // pred_check
      _
    $region3: #{tpu_custom_call.1} parent=1 // pred_check_branch
      %12 = sbr.rel (0) target = $region5
    $region4: #{tpu_custom_call.1} parent=1 // pred_region
      %s14 = ssub.s32 2048, 2048
      %15 = vsyncadd [#allocation3], %s14
      %s16 = sshll.u32 [#allocation2], 4
      %s17 = int_to_ptr.vmem [resolvable:$true] %s16
      %22 = dma.hbm_to_vmem [thread:$0]  %s0, 2048, %s17, [#allocation3], 1024, 1024, 64
    $region5: #{tpu_custom_call.1} parent=1 // pred_fallthru
      _
    // Predicated region
    $region6: #{tpu_custom_call.1} parent=1 // pred_check
      _
    $region7: #{tpu_custom_call.1} parent=1 // pred_check_branch
      %24 = sbr.rel (0) target = $region9
    $region8: #{tpu_custom_call.1} parent=1 // pred_region
      %s26 = ssub.s32 32768, 32768
      %27 = vsyncadd [#allocation6], %s26
      %s28 = sshll.u32 [#allocation5], 4
      %s29 = int_to_ptr.vmem [resolvable:$true] %s28
      %34 = dma.hbm_to_vmem [thread:$0]  %s1, 32768, %s29, [#allocation6], 256, 256, 16
    $region9: #{tpu_custom_call.1} parent=1 // pred_fallthru
      _
    // Predicated region
    $region10: #{tpu_custom_call.1} parent=1 // pred_check
      _
    $region11: #{tpu_custom_call.1} parent=1 // pred_check_branch
      %36 = sbr.rel (0) target = $region13
    $region12: #{tpu_custom_call.1} parent=1 // pred_region
      _
    $region13: #{tpu_custom_call.1} parent=1 // pred_fallthru
      _
    // Predicated region
    $region14: #{tpu_custom_call.1} parent=1 // pred_check
      _
    $region15: #{tpu_custom_call.1} parent=1 // pred_check_branch
      %38 = sbr.rel (0) target = $region17
    $region16: #{tpu_custom_call.1} parent=1 // pred_region
      %39 = dma.done [#allocation3], 2048
    $region17: #{tpu_custom_call.1} parent=1 // pred_fallthru
      _
    // Predicated region
    $region18: #{tpu_custom_call.1} parent=1 // pred_check
      _
    $region19: #{tpu_custom_call.1} parent=1 // pred_check_branch
      %41 = sbr.rel (0) target = $region21
    $region20: #{tpu_custom_call.1} parent=1 // pred_region
      %42 = dma.done [#allocation6], 32768
    $region21: #{tpu_custom_call.1} parent=1 // pred_fallthru
      _
    %v43 = vld [vmem:[#allocation2] sm:$0xff]
    %v44 = vld [vmem:[#allocation2 + $0x8] sm:$0xff]
    %v45 = vld [vmem:[#allocation2 + $0x10] sm:$0xff]
    %v46 = vld [vmem:[#allocation2 + $0x18] sm:$0xff]
    %v47 = vld [vmem:[#allocation2 + $0x20] sm:$0xff]
    %v48 = vld [vmem:[#allocation2 + $0x28] sm:$0xff]
    %v49 = vld [vmem:[#allocation2 + $0x30] sm:$0xff]
    %v50 = vld [vmem:[#allocation2 + $0x38] sm:$0xff]
    %v51 = vld [vmem:[#allocation2 + $0x40] sm:$0xff]
    %v52 = vld [vmem:[#allocation2 + $0x48] sm:$0xff]
    %v53 = vld [vmem:[#allocation2 + $0x50] sm:$0xff]
    %v54 = vld [vmem:[#allocation2 + $0x58] sm:$0xff]
    %v55 = vld [vmem:[#allocation2 + $0x60] sm:$0xff]
    %v56 = vld [vmem:[#allocation2 + $0x68] sm:$0xff]
    %v57 = vld [vmem:[#allocation2 + $0x70] sm:$0xff]
    %v58 = vld [vmem:[#allocation2 + $0x78] sm:$0xff]
    %v59 = vld [vmem:[#allocation5] sm:$0xff]
    %v60 = vld [vmem:[#allocation5 + $0x8] sm:$0xff]
    %v61 = vld [vmem:[#allocation5 + $0x10] sm:$0xff]
    %v62 = vld [vmem:[#allocation5 + $0x18] sm:$0xff]
    %v63 = vld [vmem:[#allocation5 + $0x20] sm:$0xff]
    %v64 = vld [vmem:[#allocation5 + $0x28] sm:$0xff]
    %v65 = vld [vmem:[#allocation5 + $0x30] sm:$0xff]
    %v66 = vld [vmem:[#allocation5 + $0x38] sm:$0xff]
    %v67 = vld [vmem:[#allocation5 + $0x40] sm:$0xff]
    %v68 = vld [vmem:[#allocation5 + $0x48] sm:$0xff]
    %v69 = vld [vmem:[#allocation5 + $0x50] sm:$0xff]
    %v70 = vld [vmem:[#allocation5 + $0x58] sm:$0xff]
    %v71 = vld [vmem:[#allocation5 + $0x60] sm:$0xff]
    %v72 = vld [vmem:[#allocation5 + $0x68] sm:$0xff]
    %v73 = vld [vmem:[#allocation5 + $0x70] sm:$0xff]
    %v74 = vld [vmem:[#allocation5 + $0x78] sm:$0xff]
    %v75 = vld [vmem:[#allocation5 + $0x80] sm:$0xff]
    %v76 = vld [vmem:[#allocation5 + $0x88] sm:$0xff]
    %v77 = vld [vmem:[#allocation5 + $0x90] sm:$0xff]
    %v78 = vld [vmem:[#allocation5 + $0x98] sm:$0xff]
    %v79 = vld [vmem:[#allocation5 + $0xa0] sm:$0xff]
    %v80 = vld [vmem:[#allocation5 + $0xa8] sm:$0xff]
    %v81 = vld [vmem:[#allocation5 + $0xb0] sm:$0xff]
    %v82 = vld [vmem:[#allocation5 + $0xb8] sm:$0xff]
    %v83 = vld [vmem:[#allocation5 + $0xc0] sm:$0xff]
    %v84 = vld [vmem:[#allocation5 + $0xc8] sm:$0xff]
    %v85 = vld [vmem:[#allocation5 + $0xd0] sm:$0xff]
    %v86 = vld [vmem:[#allocation5 + $0xd8] sm:$0xff]
    %v87 = vld [vmem:[#allocation5 + $0xe0] sm:$0xff]
    %v88 = vld [vmem:[#allocation5 + $0xe8] sm:$0xff]
    %v89 = vld [vmem:[#allocation5 + $0xf0] sm:$0xff]
    %v90 = vld [vmem:[#allocation5 + $0xf8] sm:$0xff]
    %v91 = vld [vmem:[#allocation5 + $0x100] sm:$0xff]
    %v92 = vld [vmem:[#allocation5 + $0x108] sm:$0xff]
    %v93 = vld [vmem:[#allocation5 + $0x110] sm:$0xff]
    %v94 = vld [vmem:[#allocation5 + $0x118] sm:$0xff]
    %v95 = vld [vmem:[#allocation5 + $0x120] sm:$0xff]
    %v96 = vld [vmem:[#allocation5 + $0x128] sm:$0xff]
    %v97 = vld [vmem:[#allocation5 + $0x130] sm:$0xff]
    %v98 = vld [vmem:[#allocation5 + $0x138] sm:$0xff]
    %v99 = vld [vmem:[#allocation5 + $0x140] sm:$0xff]
    %v100 = vld [vmem:[#allocation5 + $0x148] sm:$0xff]
    %v101 = vld [vmem:[#allocation5 + $0x150] sm:$0xff]
    %v102 = vld [vmem:[#allocation5 + $0x158] sm:$0xff]
    %v103 = vld [vmem:[#allocation5 + $0x160] sm:$0xff]
    %v104 = vld [vmem:[#allocation5 + $0x168] sm:$0xff]
    %v105 = vld [vmem:[#allocation5 + $0x170] sm:$0xff]
    %v106 = vld [vmem:[#allocation5 + $0x178] sm:$0xff]
    %v107 = vld [vmem:[#allocation5 + $0x180] sm:$0xff]
    %v108 = vld [vmem:[#allocation5 + $0x188] sm:$0xff]
    %v109 = vld [vmem:[#allocation5 + $0x190] sm:$0xff]
    %v110 = vld [vmem:[#allocation5 + $0x198] sm:$0xff]
    %v111 = vld [vmem:[#allocation5 + $0x1a0] sm:$0xff]
    %v112 = vld [vmem:[#allocation5 + $0x1a8] sm:$0xff]
    %v113 = vld [vmem:[#allocation5 + $0x1b0] sm:$0xff]
    %v114 = vld [vmem:[#allocation5 + $0x1b8] sm:$0xff]
    %v115 = vld [vmem:[#allocation5 + $0x1c0] sm:$0xff]
    %v116 = vld [vmem:[#allocation5 + $0x1c8] sm:$0xff]
    %v117 = vld [vmem:[#allocation5 + $0x1d0] sm:$0xff]
    %v118 = vld [vmem:[#allocation5 + $0x1d8] sm:$0xff]
    %v119 = vld [vmem:[#allocation5 + $0x1e0] sm:$0xff]
    %v120 = vld [vmem:[#allocation5 + $0x1e8] sm:$0xff]
    %v121 = vld [vmem:[#allocation5 + $0x1f0] sm:$0xff]
    %v122 = vld [vmem:[#allocation5 + $0x1f8] sm:$0xff]
    %v123 = vld [vmem:[#allocation5 + $0x200] sm:$0xff]
    %v124 = vld [vmem:[#allocation5 + $0x208] sm:$0xff]
    %v125 = vld [vmem:[#allocation5 + $0x210] sm:$0xff]
    %v126 = vld [vmem:[#allocation5 + $0x218] sm:$0xff]
    %v127 = vld [vmem:[#allocation5 + $0x220] sm:$0xff]
    %v128 = vld [vmem:[#allocation5 + $0x228] sm:$0xff]
    %v129 = vld [vmem:[#allocation5 + $0x230] sm:$0xff]
    %v130 = vld [vmem:[#allocation5 + $0x238] sm:$0xff]
    %v131 = vld [vmem:[#allocation5 + $0x240] sm:$0xff]
    %v132 = vld [vmem:[#allocation5 + $0x248] sm:$0xff]
    %v133 = vld [vmem:[#allocation5 + $0x250] sm:$0xff]
    %v134 = vld [vmem:[#allocation5 + $0x258] sm:$0xff]
    %v135 = vld [vmem:[#allocation5 + $0x260] sm:$0xff]
    %v136 = vld [vmem:[#allocation5 + $0x268] sm:$0xff]
    %v137 = vld [vmem:[#allocation5 + $0x270] sm:$0xff]
    %v138 = vld [vmem:[#allocation5 + $0x278] sm:$0xff]
    %v139 = vld [vmem:[#allocation5 + $0x280] sm:$0xff]
    %v140 = vld [vmem:[#allocation5 + $0x288] sm:$0xff]
    %v141 = vld [vmem:[#allocation5 + $0x290] sm:$0xff]
    %v142 = vld [vmem:[#allocation5 + $0x298] sm:$0xff]
    %v143 = vld [vmem:[#allocation5 + $0x2a0] sm:$0xff]
    %v144 = vld [vmem:[#allocation5 + $0x2a8] sm:$0xff]
    %v145 = vld [vmem:[#allocation5 + $0x2b0] sm:$0xff]
    %v146 = vld [vmem:[#allocation5 + $0x2b8] sm:$0xff]
    %v147 = vld [vmem:[#allocation5 + $0x2c0] sm:$0xff]
    %v148 = vld [vmem:[#allocation5 + $0x2c8] sm:$0xff]
    %v149 = vld [vmem:[#allocation5 + $0x2d0] sm:$0xff]
    %v150 = vld [vmem:[#allocation5 + $0x2d8] sm:$0xff]
    %v151 = vld [vmem:[#allocation5 + $0x2e0] sm:$0xff]
    %v152 = vld [vmem:[#allocation5 + $0x2e8] sm:$0xff]
    %v153 = vld [vmem:[#allocation5 + $0x2f0] sm:$0xff]
    %v154 = vld [vmem:[#allocation5 + $0x2f8] sm:$0xff]
    %v155 = vld [vmem:[#allocation5 + $0x300] sm:$0xff]
    %v156 = vld [vmem:[#allocation5 + $0x308] sm:$0xff]
    %v157 = vld [vmem:[#allocation5 + $0x310] sm:$0xff]
    %v158 = vld [vmem:[#allocation5 + $0x318] sm:$0xff]
    %v159 = vld [vmem:[#allocation5 + $0x320] sm:$0xff]
    %v160 = vld [vmem:[#allocation5 + $0x328] sm:$0xff]
    %v161 = vld [vmem:[#allocation5 + $0x330] sm:$0xff]
    %v162 = vld [vmem:[#allocation5 + $0x338] sm:$0xff]
    %v163 = vld [vmem:[#allocation5 + $0x340] sm:$0xff]
    %v164 = vld [vmem:[#allocation5 + $0x348] sm:$0xff]
    %v165 = vld [vmem:[#allocation5 + $0x350] sm:$0xff]
    %v166 = vld [vmem:[#allocation5 + $0x358] sm:$0xff]
    %v167 = vld [vmem:[#allocation5 + $0x360] sm:$0xff]
    %v168 = vld [vmem:[#allocation5 + $0x368] sm:$0xff]
    %v169 = vld [vmem:[#allocation5 + $0x370] sm:$0xff]
    %v170 = vld [vmem:[#allocation5 + $0x378] sm:$0xff]
    %v171 = vld [vmem:[#allocation5 + $0x380] sm:$0xff]
    %v172 = vld [vmem:[#allocation5 + $0x388] sm:$0xff]
    %v173 = vld [vmem:[#allocation5 + $0x390] sm:$0xff]
    %v174 = vld [vmem:[#allocation5 + $0x398] sm:$0xff]
    %v175 = vld [vmem:[#allocation5 + $0x3a0] sm:$0xff]
    %v176 = vld [vmem:[#allocation5 + $0x3a8] sm:$0xff]
    %v177 = vld [vmem:[#allocation5 + $0x3b0] sm:$0xff]
    %v178 = vld [vmem:[#allocation5 + $0x3b8] sm:$0xff]
    %v179 = vld [vmem:[#allocation5 + $0x3c0] sm:$0xff]
    %v180 = vld [vmem:[#allocation5 + $0x3c8] sm:$0xff]
    %v181 = vld [vmem:[#allocation5 + $0x3d0] sm:$0xff]
    %v182 = vld [vmem:[#allocation5 + $0x3d8] sm:$0xff]
    %v183 = vld [vmem:[#allocation5 + $0x3e0] sm:$0xff]
    %v184 = vld [vmem:[#allocation5 + $0x3e8] sm:$0xff]
    %v185 = vld [vmem:[#allocation5 + $0x3f0] sm:$0xff]
    %v186 = vld [vmem:[#allocation5 + $0x3f8] sm:$0xff]
    %v187 = vld [vmem:[#allocation5 + $0x400] sm:$0xff]
    %v188 = vld [vmem:[#allocation5 + $0x408] sm:$0xff]
    %v189 = vld [vmem:[#allocation5 + $0x410] sm:$0xff]
    %v190 = vld [vmem:[#allocation5 + $0x418] sm:$0xff]
    %v191 = vld [vmem:[#allocation5 + $0x420] sm:$0xff]
    %v192 = vld [vmem:[#allocation5 + $0x428] sm:$0xff]
    %v193 = vld [vmem:[#allocation5 + $0x430] sm:$0xff]
    %v194 = vld [vmem:[#allocation5 + $0x438] sm:$0xff]
    %v195 = vld [vmem:[#allocation5 + $0x440] sm:$0xff]
    %v196 = vld [vmem:[#allocation5 + $0x448] sm:$0xff]
    %v197 = vld [vmem:[#allocation5 + $0x450] sm:$0xff]
    %v198 = vld [vmem:[#allocation5 + $0x458] sm:$0xff]
    %v199 = vld [vmem:[#allocation5 + $0x460] sm:$0xff]
    %v200 = vld [vmem:[#allocation5 + $0x468] sm:$0xff]
    %v201 = vld [vmem:[#allocation5 + $0x470] sm:$0xff]
    %v202 = vld [vmem:[#allocation5 + $0x478] sm:$0xff]
    %v203 = vld [vmem:[#allocation5 + $0x480] sm:$0xff]
    %v204 = vld [vmem:[#allocation5 + $0x488] sm:$0xff]
    %v205 = vld [vmem:[#allocation5 + $0x490] sm:$0xff]
    %v206 = vld [vmem:[#allocation5 + $0x498] sm:$0xff]
    %v207 = vld [vmem:[#allocation5 + $0x4a0] sm:$0xff]
    %v208 = vld [vmem:[#allocation5 + $0x4a8] sm:$0xff]
    %v209 = vld [vmem:[#allocation5 + $0x4b0] sm:$0xff]
    %v210 = vld [vmem:[#allocation5 + $0x4b8] sm:$0xff]
    %v211 = vld [vmem:[#allocation5 + $0x4c0] sm:$0xff]
    %v212 = vld [vmem:[#allocation5 + $0x4c8] sm:$0xff]
    %v213 = vld [vmem:[#allocation5 + $0x4d0] sm:$0xff]
    %v214 = vld [vmem:[#allocation5 + $0x4d8] sm:$0xff]
    %v215 = vld [vmem:[#allocation5 + $0x4e0] sm:$0xff]
    %v216 = vld [vmem:[#allocation5 + $0x4e8] sm:$0xff]
    %v217 = vld [vmem:[#allocation5 + $0x4f0] sm:$0xff]
    %v218 = vld [vmem:[#allocation5 + $0x4f8] sm:$0xff]
    %v219 = vld [vmem:[#allocation5 + $0x500] sm:$0xff]
    %v220 = vld [vmem:[#allocation5 + $0x508] sm:$0xff]
    %v221 = vld [vmem:[#allocation5 + $0x510] sm:$0xff]
    %v222 = vld [vmem:[#allocation5 + $0x518] sm:$0xff]
    %v223 = vld [vmem:[#allocation5 + $0x520] sm:$0xff]
    %v224 = vld [vmem:[#allocation5 + $0x528] sm:$0xff]
    %v225 = vld [vmem:[#allocation5 + $0x530] sm:$0xff]
    %v226 = vld [vmem:[#allocation5 + $0x538] sm:$0xff]
    %v227 = vld [vmem:[#allocation5 + $0x540] sm:$0xff]
    %v228 = vld [vmem:[#allocation5 + $0x548] sm:$0xff]
    %v229 = vld [vmem:[#allocation5 + $0x550] sm:$0xff]
    %v230 = vld [vmem:[#allocation5 + $0x558] sm:$0xff]
    %v231 = vld [vmem:[#allocation5 + $0x560] sm:$0xff]
    %v232 = vld [vmem:[#allocation5 + $0x568] sm:$0xff]
    %v233 = vld [vmem:[#allocation5 + $0x570] sm:$0xff]
    %v234 = vld [vmem:[#allocation5 + $0x578] sm:$0xff]
    %v235 = vld [vmem:[#allocation5 + $0x580] sm:$0xff]
    %v236 = vld [vmem:[#allocation5 + $0x588] sm:$0xff]
    %v237 = vld [vmem:[#allocation5 + $0x590] sm:$0xff]
    %v238 = vld [vmem:[#allocation5 + $0x598] sm:$0xff]
    %v239 = vld [vmem:[#allocation5 + $0x5a0] sm:$0xff]
    %v240 = vld [vmem:[#allocation5 + $0x5a8] sm:$0xff]
    %v241 = vld [vmem:[#allocation5 + $0x5b0] sm:$0xff]
    %v242 = vld [vmem:[#allocation5 + $0x5b8] sm:$0xff]
    %v243 = vld [vmem:[#allocation5 + $0x5c0] sm:$0xff]
    %v244 = vld [vmem:[#allocation5 + $0x5c8] sm:$0xff]
    %v245 = vld [vmem:[#allocation5 + $0x5d0] sm:$0xff]
    %v246 = vld [vmem:[#allocation5 + $0x5d8] sm:$0xff]
    %v247 = vld [vmem:[#allocation5 + $0x5e0] sm:$0xff]
    %v248 = vld [vmem:[#allocation5 + $0x5e8] sm:$0xff]
    %v249 = vld [vmem:[#allocation5 + $0x5f0] sm:$0xff]
    %v250 = vld [vmem:[#allocation5 + $0x5f8] sm:$0xff]
    %v251 = vld [vmem:[#allocation5 + $0x600] sm:$0xff]
    %v252 = vld [vmem:[#allocation5 + $0x608] sm:$0xff]
    %v253 = vld [vmem:[#allocation5 + $0x610] sm:$0xff]
    %v254 = vld [vmem:[#allocation5 + $0x618] sm:$0xff]
    %v255 = vld [vmem:[#allocation5 + $0x620] sm:$0xff]
    %v256 = vld [vmem:[#allocation5 + $0x628] sm:$0xff]
    %v257 = vld [vmem:[#allocation5 + $0x630] sm:$0xff]
    %v258 = vld [vmem:[#allocation5 + $0x638] sm:$0xff]
    %v259 = vld [vmem:[#allocation5 + $0x640] sm:$0xff]
    %v260 = vld [vmem:[#allocation5 + $0x648] sm:$0xff]
    %v261 = vld [vmem:[#allocation5 + $0x650] sm:$0xff]
    %v262 = vld [vmem:[#allocation5 + $0x658] sm:$0xff]
    %v263 = vld [vmem:[#allocation5 + $0x660] sm:$0xff]
    %v264 = vld [vmem:[#allocation5 + $0x668] sm:$0xff]
    %v265 = vld [vmem:[#allocation5 + $0x670] sm:$0xff]
    %v266 = vld [vmem:[#allocation5 + $0x678] sm:$0xff]
    %v267 = vld [vmem:[#allocation5 + $0x680] sm:$0xff]
    %v268 = vld [vmem:[#allocation5 + $0x688] sm:$0xff]
    %v269 = vld [vmem:[#allocation5 + $0x690] sm:$0xff]
    %v270 = vld [vmem:[#allocation5 + $0x698] sm:$0xff]
    %v271 = vld [vmem:[#allocation5 + $0x6a0] sm:$0xff]
    %v272 = vld [vmem:[#allocation5 + $0x6a8] sm:$0xff]
    %v273 = vld [vmem:[#allocation5 + $0x6b0] sm:$0xff]
    %v274 = vld [vmem:[#allocation5 + $0x6b8] sm:$0xff]
    %v275 = vld [vmem:[#allocation5 + $0x6c0] sm:$0xff]
    %v276 = vld [vmem:[#allocation5 + $0x6c8] sm:$0xff]
    %v277 = vld [vmem:[#allocation5 + $0x6d0] sm:$0xff]
    %v278 = vld [vmem:[#allocation5 + $0x6d8] sm:$0xff]
    %v279 = vld [vmem:[#allocation5 + $0x6e0] sm:$0xff]
    %v280 = vld [vmem:[#allocation5 + $0x6e8] sm:$0xff]
    %v281 = vld [vmem:[#allocation5 + $0x6f0] sm:$0xff]
    %v282 = vld [vmem:[#allocation5 + $0x6f8] sm:$0xff]
    %v283 = vld [vmem:[#allocation5 + $0x700] sm:$0xff]
    %v284 = vld [vmem:[#allocation5 + $0x708] sm:$0xff]
    %v285 = vld [vmem:[#allocation5 + $0x710] sm:$0xff]
    %v286 = vld [vmem:[#allocation5 + $0x718] sm:$0xff]
    %v287 = vld [vmem:[#allocation5 + $0x720] sm:$0xff]
    %v288 = vld [vmem:[#allocation5 + $0x728] sm:$0xff]
    %v289 = vld [vmem:[#allocation5 + $0x730] sm:$0xff]
    %v290 = vld [vmem:[#allocation5 + $0x738] sm:$0xff]
    %v291 = vld [vmem:[#allocation5 + $0x740] sm:$0xff]
    %v292 = vld [vmem:[#allocation5 + $0x748] sm:$0xff]
    %v293 = vld [vmem:[#allocation5 + $0x750] sm:$0xff]
    %v294 = vld [vmem:[#allocation5 + $0x758] sm:$0xff]
    %v295 = vld [vmem:[#allocation5 + $0x760] sm:$0xff]
    %v296 = vld [vmem:[#allocation5 + $0x768] sm:$0xff]
    %v297 = vld [vmem:[#allocation5 + $0x770] sm:$0xff]
    %v298 = vld [vmem:[#allocation5 + $0x778] sm:$0xff]
    %v299 = vld [vmem:[#allocation5 + $0x780] sm:$0xff]
    %v300 = vld [vmem:[#allocation5 + $0x788] sm:$0xff]
    %v301 = vld [vmem:[#allocation5 + $0x790] sm:$0xff]
    %v302 = vld [vmem:[#allocation5 + $0x798] sm:$0xff]
    %v303 = vld [vmem:[#allocation5 + $0x7a0] sm:$0xff]
    %v304 = vld [vmem:[#allocation5 + $0x7a8] sm:$0xff]
    %v305 = vld [vmem:[#allocation5 + $0x7b0] sm:$0xff]
    %v306 = vld [vmem:[#allocation5 + $0x7b8] sm:$0xff]
    %v307 = vld [vmem:[#allocation5 + $0x7c0] sm:$0xff]
    %v308 = vld [vmem:[#allocation5 + $0x7c8] sm:$0xff]
    %v309 = vld [vmem:[#allocation5 + $0x7d0] sm:$0xff]
    %v310 = vld [vmem:[#allocation5 + $0x7d8] sm:$0xff]
    %v311 = vld [vmem:[#allocation5 + $0x7e0] sm:$0xff]
    %v312 = vld [vmem:[#allocation5 + $0x7e8] sm:$0xff]
    %v313 = vld [vmem:[#allocation5 + $0x7f0] sm:$0xff]
    %v314 = vld [vmem:[#allocation5 + $0x7f8] sm:$0xff]
    %v315 = vld [vmem:[%s2] sm:$0x3]
    %v317 = vlaneseq
    %v318 = vshrl.u32 %v317, 7
    %v319 = vsub.s32 0, %v318
    %v320 = vrot.slane %v315, %v319
    %v321 = vlaneseq
    %v322 = vshrl.u32 %v321, 7
    %v323 = vsub.s32 1, %v322
    %v324 = vrot.slane %v315, %v323
    %327 = vmatprep.subr.mxu0 %v90
    %328 = vmatpush1.msra.mxu0 %v89
    %329 = vmatprep.subr.mxu0 %v88
    %330 = vmatpush1.msra.mxu0 %v87
    %331 = vmatprep.subr.mxu0 %v86
    %332 = vmatpush1.msra.mxu0 %v85
    %333 = vmatprep.subr.mxu0 %v84
    %334 = vmatpush1.msra.mxu0 %v83
    %335 = vmatprep.subr.mxu0 %v82
    %336 = vmatpush1.msra.mxu0 %v81
    %337 = vmatprep.subr.mxu0 %v80
    %338 = vmatpush1.msra.mxu0 %v79
    %339 = vmatprep.subr.mxu0 %v78
    %340 = vmatpush1.msra.mxu0 %v77
    %341 = vmatprep.subr.mxu0 %v76
    %342 = vmatpush1.msra.mxu0 %v75
    %343 = vmatprep.subr.mxu0 %v74
    %344 = vmatpush1.msra.mxu0 %v73
    %345 = vmatprep.subr.mxu0 %v72
    %346 = vmatpush1.msra.mxu0 %v71
    %347 = vmatprep.subr.mxu0 %v70
    %348 = vmatpush1.msra.mxu0 %v69
    %349 = vmatprep.subr.mxu0 %v68
    %350 = vmatpush1.msra.mxu0 %v67
    %351 = vmatprep.subr.mxu0 %v66
    %352 = vmatpush1.msra.mxu0 %v65
    %353 = vmatprep.subr.mxu0 %v64
    %354 = vmatpush1.msra.mxu0 %v63
    %355 = vmatprep.subr.mxu0 %v62
    %356 = vmatpush1.msra.mxu0 %v61
    %357 = vmatprep.subr.mxu0 %v60
    %358 = vmatpush1.msra.mxu0 %v59
    %359 = vmatprep.subr.mxu0 %v122
    %360 = vmatpush2.msra.mxu0 %v121
    %361 = vmatprep.subr.mxu0 %v120
    %362 = vmatpush2.msra.mxu0 %v119
    %363 = vmatprep.subr.mxu0 %v118
    %364 = vmatpush2.msra.mxu0 %v117
    %365 = vmatprep.subr.mxu0 %v116
    %366 = vmatpush2.msra.mxu0 %v115
    %367 = vmatprep.subr.mxu0 %v114
    %368 = vmatpush2.msra.mxu0 %v113
    %369 = vmatprep.subr.mxu0 %v112
    %370 = vmatpush2.msra.mxu0 %v111
    %371 = vmatprep.subr.mxu0 %v110
    %372 = vmatpush2.msra.mxu0 %v109
    %373 = vmatprep.subr.mxu0 %v108
    %374 = vmatpush2.msra.mxu0 %v107
    %375 = vmatprep.subr.mxu0 %v106
    %376 = vmatpush2.msra.mxu0 %v105
    %377 = vmatprep.subr.mxu0 %v104
    %378 = vmatpush2.msra.mxu0 %v103
    %379 = vmatprep.subr.mxu0 %v102
    %380 = vmatpush2.msra.mxu0 %v101
    %381 = vmatprep.subr.mxu0 %v100
    %382 = vmatpush2.msra.mxu0 %v99
    %383 = vmatprep.subr.mxu0 %v98
    %384 = vmatpush2.msra.mxu0 %v97
    %385 = vmatprep.subr.mxu0 %v96
    %386 = vmatpush2.msra.mxu0 %v95
    %387 = vmatprep.subr.mxu0 %v94
    %388 = vmatpush2.msra.mxu0 %v93
    %389 = vmatprep.subr.mxu0 %v92
    %390 = vmatpush2.msra.mxu0 %v91
    %391 = vmatprep.mubr.f32.mxu0 %v44
    %392 = vmatmul.mubr.f32.gmra.mxu0 %v43
    %v393 = vpop.f32.mrf.mxu0
    %v394 = vadd.f32 %v320, %v393
    %v395 = vpop.f32.mrf.mxu0
    %v396 = vadd.f32 %v324, %v395
    %397 = vmatprep.mubr.f32.mxu0 %v52
    %398 = vmatmul.mubr.f32.gmra.mxu0 %v51
    %v399 = vpop.f32.mrf.mxu0
    %v400 = vadd.f32 %v320, %v399
    %v401 = vpop.f32.mrf.mxu0
    %v402 = vadd.f32 %v324, %v401
    %403 = vdwg.mxu0
    %404 = vmatprep.subr.mxu0 %v154
    %405 = vmatpush1.msra.mxu0 %v153
    %406 = vmatprep.subr.mxu0 %v152
    %407 = vmatpush1.msra.mxu0 %v151
    %408 = vmatprep.subr.mxu0 %v150
    %409 = vmatpush1.msra.mxu0 %v149
    %410 = vmatprep.subr.mxu0 %v148
    %411 = vmatpush1.msra.mxu0 %v147
    %412 = vmatprep.subr.mxu0 %v146
    %413 = vmatpush1.msra.mxu0 %v145
    %414 = vmatprep.subr.mxu0 %v144
    %415 = vmatpush1.msra.mxu0 %v143
    %416 = vmatprep.subr.mxu0 %v142
    %417 = vmatpush1.msra.mxu0 %v141
    %418 = vmatprep.subr.mxu0 %v140
    %419 = vmatpush1.msra.mxu0 %v139
    %420 = vmatprep.subr.mxu0 %v138
    %421 = vmatpush1.msra.mxu0 %v137
    %422 = vmatprep.subr.mxu0 %v136
    %423 = vmatpush1.msra.mxu0 %v135
    %424 = vmatprep.subr.mxu0 %v134
    %425 = vmatpush1.msra.mxu0 %v133
    %426 = vmatprep.subr.mxu0 %v132
    %427 = vmatpush1.msra.mxu0 %v131
    %428 = vmatprep.subr.mxu0 %v130
    %429 = vmatpush1.msra.mxu0 %v129
    %430 = vmatprep.subr.mxu0 %v128
    %431 = vmatpush1.msra.mxu0 %v127
    %432 = vmatprep.subr.mxu0 %v126
    %433 = vmatpush1.msra.mxu0 %v125
    %434 = vmatprep.subr.mxu0 %v124
    %435 = vmatpush1.msra.mxu0 %v123
    %436 = vmatprep.subr.mxu0 %v186
    %437 = vmatpush2.msra.mxu0 %v185
    %438 = vmatprep.subr.mxu0 %v184
    %439 = vmatpush2.msra.mxu0 %v183
    %440 = vmatprep.subr.mxu0 %v182
    %441 = vmatpush2.msra.mxu0 %v181
    %442 = vmatprep.subr.mxu0 %v180
    %443 = vmatpush2.msra.mxu0 %v179
    %444 = vmatprep.subr.mxu0 %v178
    %445 = vmatpush2.msra.mxu0 %v177
    %446 = vmatprep.subr.mxu0 %v176
    %447 = vmatpush2.msra.mxu0 %v175
    %448 = vmatprep.subr.mxu0 %v174
    %449 = vmatpush2.msra.mxu0 %v173
    %450 = vmatprep.subr.mxu0 %v172
    %451 = vmatpush2.msra.mxu0 %v171
    %452 = vmatprep.subr.mxu0 %v170
    %453 = vmatpush2.msra.mxu0 %v169
    %454 = vmatprep.subr.mxu0 %v168
    %455 = vmatpush2.msra.mxu0 %v167
    %456 = vmatprep.subr.mxu0 %v166
    %457 = vmatpush2.msra.mxu0 %v165
    %458 = vmatprep.subr.mxu0 %v164
    %459 = vmatpush2.msra.mxu0 %v163
    %460 = vmatprep.subr.mxu0 %v162
    %461 = vmatpush2.msra.mxu0 %v161
    %462 = vmatprep.subr.mxu0 %v160
    %463 = vmatpush2.msra.mxu0 %v159
    %464 = vmatprep.subr.mxu0 %v158
    %465 = vmatpush2.msra.mxu0 %v157
    %466 = vmatprep.subr.mxu0 %v156
    %467 = vmatpush2.msra.mxu0 %v155
    %468 = vmatprep.mubr.f32.mxu0 %v46
    %469 = vmatmul.mubr.f32.gmra.mxu0 %v45
    %v470 = vpop.f32.mrf.mxu0
    %v471 = vadd.f32 %v394, %v470
    %v472 = vpop.f32.mrf.mxu0
    %v473 = vadd.f32 %v396, %v472
    %474 = vmatprep.mubr.f32.mxu0 %v54
    %475 = vmatmul.mubr.f32.gmra.mxu0 %v53
    %v476 = vpop.f32.mrf.mxu0
    %v477 = vadd.f32 %v400, %v476
    %v478 = vpop.f32.mrf.mxu0
    %v479 = vadd.f32 %v402, %v478
    %480 = vdwg.mxu0
    %481 = vmatprep.subr.mxu0 %v218
    %482 = vmatpush1.msra.mxu0 %v217
    %483 = vmatprep.subr.mxu0 %v216
    %484 = vmatpush1.msra.mxu0 %v215
    %485 = vmatprep.subr.mxu0 %v214
    %486 = vmatpush1.msra.mxu0 %v213
    %487 = vmatprep.subr.mxu0 %v212
    %488 = vmatpush1.msra.mxu0 %v211
    %489 = vmatprep.subr.mxu0 %v210
    %490 = vmatpush1.msra.mxu0 %v209
    %491 = vmatprep.subr.mxu0 %v208
    %492 = vmatpush1.msra.mxu0 %v207
    %493 = vmatprep.subr.mxu0 %v206
    %494 = vmatpush1.msra.mxu0 %v205
    %495 = vmatprep.subr.mxu0 %v204
    %496 = vmatpush1.msra.mxu0 %v203
    %497 = vmatprep.subr.mxu0 %v202
    %498 = vmatpush1.msra.mxu0 %v201
    %499 = vmatprep.subr.mxu0 %v200
    %500 = vmatpush1.msra.mxu0 %v199
    %501 = vmatprep.subr.mxu0 %v198
    %502 = vmatpush1.msra.mxu0 %v197
    %503 = vmatprep.subr.mxu0 %v196
    %504 = vmatpush1.msra.mxu0 %v195
    %505 = vmatprep.subr.mxu0 %v194
    %506 = vmatpush1.msra.mxu0 %v193
    %507 = vmatprep.subr.mxu0 %v192
    %508 = vmatpush1.msra.mxu0 %v191
    %509 = vmatprep.subr.mxu0 %v190
    %510 = vmatpush1.msra.mxu0 %v189
    %511 = vmatprep.subr.mxu0 %v188
    %512 = vmatpush1.msra.mxu0 %v187
    %513 = vmatprep.subr.mxu0 %v250
    %514 = vmatpush2.msra.mxu0 %v249
    %515 = vmatprep.subr.mxu0 %v248
    %516 = vmatpush2.msra.mxu0 %v247
    %517 = vmatprep.subr.mxu0 %v246
    %518 = vmatpush2.msra.mxu0 %v245
    %519 = vmatprep.subr.mxu0 %v244
    %520 = vmatpush2.msra.mxu0 %v243
    %521 = vmatprep.subr.mxu0 %v242
    %522 = vmatpush2.msra.mxu0 %v241
    %523 = vmatprep.subr.mxu0 %v240
    %524 = vmatpush2.msra.mxu0 %v239
    %525 = vmatprep.subr.mxu0 %v238
    %526 = vmatpush2.msra.mxu0 %v237
    %527 = vmatprep.subr.mxu0 %v236
    %528 = vmatpush2.msra.mxu0 %v235
    %529 = vmatprep.subr.mxu0 %v234
    %530 = vmatpush2.msra.mxu0 %v233
    %531 = vmatprep.subr.mxu0 %v232
    %532 = vmatpush2.msra.mxu0 %v231
    %533 = vmatprep.subr.mxu0 %v230
    %534 = vmatpush2.msra.mxu0 %v229
    %535 = vmatprep.subr.mxu0 %v228
    %536 = vmatpush2.msra.mxu0 %v227
    %537 = vmatprep.subr.mxu0 %v226
    %538 = vmatpush2.msra.mxu0 %v225
    %539 = vmatprep.subr.mxu0 %v224
    %540 = vmatpush2.msra.mxu0 %v223
    %541 = vmatprep.subr.mxu0 %v222
    %542 = vmatpush2.msra.mxu0 %v221
    %543 = vmatprep.subr.mxu0 %v220
    %544 = vmatpush2.msra.mxu0 %v219
    %545 = vmatprep.mubr.f32.mxu0 %v48
    %546 = vmatmul.mubr.f32.gmra.mxu0 %v47
    %v547 = vpop.f32.mrf.mxu0
    %v548 = vadd.f32 %v471, %v547
    %v549 = vpop.f32.mrf.mxu0
    %v550 = vadd.f32 %v473, %v549
    %551 = vmatprep.mubr.f32.mxu0 %v56
    %552 = vmatmul.mubr.f32.gmra.mxu0 %v55
    %v553 = vpop.f32.mrf.mxu0
    %v554 = vadd.f32 %v477, %v553
    %v555 = vpop.f32.mrf.mxu0
    %v556 = vadd.f32 %v479, %v555
    %557 = vdwg.mxu0
    %558 = vmatprep.subr.mxu0 %v282
    %559 = vmatpush1.msra.mxu0 %v281
    %560 = vmatprep.subr.mxu0 %v280
    %561 = vmatpush1.msra.mxu0 %v279
    %562 = vmatprep.subr.mxu0 %v278
    %563 = vmatpush1.msra.mxu0 %v277
    %564 = vmatprep.subr.mxu0 %v276
    %565 = vmatpush1.msra.mxu0 %v275
    %566 = vmatprep.subr.mxu0 %v274
    %567 = vmatpush1.msra.mxu0 %v273
    %568 = vmatprep.subr.mxu0 %v272
    %569 = vmatpush1.msra.mxu0 %v271
    %570 = vmatprep.subr.mxu0 %v270
    %571 = vmatpush1.msra.mxu0 %v269
    %572 = vmatprep.subr.mxu0 %v268
    %573 = vmatpush1.msra.mxu0 %v267
    %574 = vmatprep.subr.mxu0 %v266
    %575 = vmatpush1.msra.mxu0 %v265
    %576 = vmatprep.subr.mxu0 %v264
    %577 = vmatpush1.msra.mxu0 %v263
    %578 = vmatprep.subr.mxu0 %v262
    %579 = vmatpush1.msra.mxu0 %v261
    %580 = vmatprep.subr.mxu0 %v260
    %581 = vmatpush1.msra.mxu0 %v259
    %582 = vmatprep.subr.mxu0 %v258
    %583 = vmatpush1.msra.mxu0 %v257
    %584 = vmatprep.subr.mxu0 %v256
    %585 = vmatpush1.msra.mxu0 %v255
    %586 = vmatprep.subr.mxu0 %v254
    %587 = vmatpush1.msra.mxu0 %v253
    %588 = vmatprep.subr.mxu0 %v252
    %589 = vmatpush1.msra.mxu0 %v251
    %590 = vmatprep.subr.mxu0 %v314
    %591 = vmatpush2.msra.mxu0 %v313
    %592 = vmatprep.subr.mxu0 %v312
    %593 = vmatpush2.msra.mxu0 %v311
    %594 = vmatprep.subr.mxu0 %v310
    %595 = vmatpush2.msra.mxu0 %v309
    %596 = vmatprep.subr.mxu0 %v308
    %597 = vmatpush2.msra.mxu0 %v307
    %598 = vmatprep.subr.mxu0 %v306
    %599 = vmatpush2.msra.mxu0 %v305
    %600 = vmatprep.subr.mxu0 %v304
    %601 = vmatpush2.msra.mxu0 %v303
    %602 = vmatprep.subr.mxu0 %v302
    %603 = vmatpush2.msra.mxu0 %v301
    %604 = vmatprep.subr.mxu0 %v300
    %605 = vmatpush2.msra.mxu0 %v299
    %606 = vmatprep.subr.mxu0 %v298
    %607 = vmatpush2.msra.mxu0 %v297
    %608 = vmatprep.subr.mxu0 %v296
    %609 = vmatpush2.msra.mxu0 %v295
    %610 = vmatprep.subr.mxu0 %v294
    %611 = vmatpush2.msra.mxu0 %v293
    %612 = vmatprep.subr.mxu0 %v292
    %613 = vmatpush2.msra.mxu0 %v291
    %614 = vmatprep.subr.mxu0 %v290
    %615 = vmatpush2.msra.mxu0 %v289
    %616 = vmatprep.subr.mxu0 %v288
    %617 = vmatpush2.msra.mxu0 %v287
    %618 = vmatprep.subr.mxu0 %v286
    %619 = vmatpush2.msra.mxu0 %v285
    %620 = vmatprep.subr.mxu0 %v284
    %621 = vmatpush2.msra.mxu0 %v283
    %622 = vmatprep.mubr.f32.mxu0 %v50
    %623 = vmatmul.mubr.f32.gmra.mxu0 %v49
    %v624 = vpop.f32.mrf.mxu0
    %v625 = vadd.f32 %v548, %v624
    %v626 = vpop.f32.mrf.mxu0
    %v627 = vadd.f32 %v550, %v626
    %628 = vmatprep.mubr.f32.mxu0 %v58
    %629 = vmatmul.mubr.f32.gmra.mxu0 %v57
    %v630 = vpop.f32.mrf.mxu0
    %v631 = vadd.f32 %v554, %v630
    %v632 = vpop.f32.mrf.mxu0
    %v633 = vadd.f32 %v556, %v632
    %634 = vdwg.mxu0
    %vm635 = vcmask 80896
    %v636 = vsel %vm635, %v625, -inf
    %637 = vmax.xlane.f32.xlu0 %v636
    %v638 = vpop.xlane.xlu0 %637
    %v639 = vsel %vm635, %v631, -inf
    %640 = vmax.xlane.f32.xlu0 %v639
    %v641 = vpop.xlane.xlu0 %640
    %v642 = vsub.f32 %v625, %v638
    %v643 = vsub.f32 %v631, %v641
    %v644 = vmul.f32 %v642, 1.442695
    %v645 = vpow.pop %v644
    %v646 = vmul.f32 %v643, 1.442695
    %v647 = vpow.pop %v646
    %v648 = vsel %vm635, %v645, 0.0
    %649 = vadd.xlane.f32.xlu0 %v648
    %v650 = vpop.xlane.xlu0 %649
    %v651 = vsel %vm635, %v647, 0.0
    %652 = vadd.xlane.f32.xlu0 %v651
    %v653 = vpop.xlane.xlu0 %652
    %v654 = vrcp.pop %v650
    %v655 = vrcp.pop %v653
    %v656 = vmul.f32 %v645, %v654
    %v657 = vmul.f32 %v647, %v655
    %v658 = vsel %vm635, %v627, -inf
    %659 = vmax.xlane.f32.xlu0 %v658
    %v660 = vpop.xlane.xlu0 %659
    %v661 = vsel %vm635, %v633, -inf
    %662 = vmax.xlane.f32.xlu0 %v661
    %v663 = vpop.xlane.xlu0 %662
    %v664 = vsub.f32 %v627, %v660
    %v665 = vsub.f32 %v633, %v663
    %v666 = vmul.f32 %v664, 1.442695
    %v667 = vpow.pop %v666
    %v668 = vmul.f32 %v665, 1.442695
    %v669 = vpow.pop %v668
    %v670 = vsel %vm635, %v667, 0.0
    %671 = vadd.xlane.f32.xlu0 %v670
    %v672 = vpop.xlane.xlu0 %671
    %v673 = vsel %vm635, %v669, 0.0
    %674 = vadd.xlane.f32.xlu0 %v673
    %v675 = vpop.xlane.xlu0 %674
    %v676 = vrcp.pop %v672
    %v677 = vrcp.pop %v675
    %v678 = vmul.f32 %v667, %v676
    %v679 = vmul.f32 %v669, %v677
    %vm680 = vcmp.gt.f32.partialorder %v654, 0.5
    %vm681 = vcmp.gt.f32.partialorder %v655, 0.5
    %v682 = vsel %vm680, 1, 0
    %v683 = vsel %vm681, 1, 0
    %vm684 = vcmp.eq.s32.totalorder %v682, 1
    %vm685 = vcmp.eq.s32.totalorder %v683, 1
    %v686 = vsel %vm684, %v656, %v678
    %v687 = vsel %vm685, %v657, %v679
    %688 = vst.msk [vmem:[#allocation7] sm:$0xff] %vm635, %v686
    %689 = vst.msk [vmem:[#allocation7 + $0x8] sm:$0xff] %vm635, %v687
    // Predicated region
    $region22: #{tpu_custom_call.1} parent=1 // pred_check
      _
    $region23: #{tpu_custom_call.1} parent=1 // pred_check_branch
      %691 = sbr.rel (0) target = $region25
    $region24: #{tpu_custom_call.1} parent=1 // pred_region
      %s693 = ssub.s32 256, 256
      %694 = vsyncadd [#allocation4], %s693
      %s695 = sshll.u32 [#allocation7], 4
      %s696 = int_to_ptr.vmem [resolvable:$true] %s695
      %701 = dma.vmem_to_hbm [thread:$0]  %s696, 256, %s3, [#allocation4], 128, 128, 8
    $region25: #{tpu_custom_call.1} parent=1 // pred_fallthru
      _
    // Predicated region
    $region26: #{tpu_custom_call.1} parent=1 // pred_check
      _
    $region27: #{tpu_custom_call.1} parent=1 // pred_check_branch
      %703 = sbr.rel (0) target = $region29
    $region28: #{tpu_custom_call.1} parent=1 // pred_region
      %704 = dma.done [#allocation4], 256
    $region29: #{tpu_custom_call.1} parent=1 // pred_fallthru
      _
    %705 = vsyncpa [#allocation3], 1
    %706 = vsyncpa [#allocation6], 1
    %707 = vsyncpa [#allocation4], 1

</llo_original>
